<compile_context>
chip_gen: v5e
topology: v5e:2x2
jax: 0.10.0
libtpu: 0.0.40
codegen_flags: <defaults>
</compile_context>

<pallas_src>
import functools
import math

import jax
import jax.numpy as jnp
import numpy as np
from jax.experimental import pallas as pl
from jax.experimental.pallas import tpu as pltpu

_LOG2E = math.log2(math.e)
_MASK_FILL = -1000000000.0  # matches the module's masked_fill value


def _attention_body(q, k, v, bias, o_ref, attn_ref, *, scale, matmul_dtype):
    if matmul_dtype is not None:
        q = q.astype(matmul_dtype)
        k = k.astype(matmul_dtype)
        v = v.astype(matmul_dtype)
    # scale folds 1/temperature AND log2(e): the softmax below uses exp2.
    q = q * jnp.asarray(scale, dtype=q.dtype)
    # scores (TQ, Lk) with f32 accumulation on the MXU
    s = jax.lax.dot_general(
        q, k,
        dimension_numbers=(((1,), (1,)), ((), ())),
        preferred_element_type=jnp.float32,
    )
    if bias is not None:
        # additive mask bias (already scaled by log2e), broadcasts over (TQ, Lk)
        s = s + bias
    m = jnp.max(s, axis=-1, keepdims=True)
    p = jnp.exp2(s - m)
    denom = jnp.sum(p, axis=-1, keepdims=True)
    # exact reciprocal: attn is a returned output checked at tight tolerance.
    inv_den = pl.reciprocal(denom, approx=False)

    if attn_ref.dtype == v.dtype:
        # One full-tile normalize+cast; reuse it as the matmul operand.
        attn = (p * inv_den).astype(attn_ref.dtype)
        attn_ref[...] = attn
        o = jnp.dot(attn, v, preferred_element_type=jnp.float32)
    else:
        # Decouple normalization from the MXU: scale the small (TQ, Dv) result.
        o = jnp.dot(p.astype(v.dtype), v,
                    preferred_element_type=jnp.float32) * inv_den
        attn_ref[...] = (p * inv_den).astype(attn_ref.dtype)
    o_ref[...] = o.astype(o_ref.dtype)


def _sdpa_kernel(q_ref, k_ref, v_ref, o_ref, attn_ref, *, scale, matmul_dtype):
    _attention_body(q_ref[...], k_ref[...], v_ref[...], None, o_ref, attn_ref,
                    scale=scale, matmul_dtype=matmul_dtype)


def _sdpa_bias_kernel(q_ref, k_ref, v_ref, bias_ref, o_ref, attn_ref, *,
                      scale, matmul_dtype):
    _attention_body(q_ref[...], k_ref[...], v_ref[...], bias_ref[...], o_ref,
                    attn_ref, scale=scale, matmul_dtype=matmul_dtype)


def _mask_index_map(has_b, has_h, has_q):
    def im(b, h, t):
        return (b if has_b else 0,
                h if has_h else 0,
                t if has_q else 0,
                0)
    return im


def _is_v5e():
    try:
        kind = jax.devices()[0].device_kind.lower()
    except Exception:
        return False
    return ("v5 lite" in kind) or ("v5e" in kind) or ("v5lite" in kind)


def _vmem_capacity_bytes():
    try:
        return int(pltpu.get_tpu_info().vmem_capacity_bytes)
    except Exception:
        return 128 * 1024 * 1024


def scaled_dot_product_attention(q, k, v, temperature, mask=None, *,
                                 block_q=None, attn_dtype=None,
                                 matmul_dtype=None):
    """Pallas implementation of ScaledDotProductAttention.forward.

    q: (B, H, Lq, Dk), k: (B, H, Lk, Dk), v: (B, H, Lk, Dv)
    mask (optional): any shape broadcastable to (B, H, Lq, Lk); 0 => masked.
    attn_dtype: dtype of the returned attn matrix (default q.dtype).
    matmul_dtype: optional lower-precision operand dtype for the matmuls
      (e.g. jnp.bfloat16 on f32 inputs) with f32 accumulation.
    Returns (output, attn) with shapes (B, H, Lq, Dv), (B, H, Lq, Lk).
    """
    B, H, Lq, Dk = q.shape
    Lk = k.shape[2]
    Dv = v.shape[3]
    in_esize = jnp.dtype(q.dtype).itemsize
    out_dtype = q.dtype
    attn_dtype = jnp.dtype(attn_dtype) if attn_dtype is not None else jnp.dtype(q.dtype)
    attn_esize = attn_dtype.itemsize

    # ---- pre-convert the mask to an additive f32 bias (broadcastable shape).
    # Note: additive-bias == masked_fill(-1e9) semantics except for rows that
    # are fully masked (degenerate: no valid key at all).
    bias = None
    if mask is not None:
        mask = jnp.asarray(mask)
        while mask.ndim < 4:
            mask = mask[None]
        bias = jnp.where(mask == 0,
                         jnp.float32(_MASK_FILL * _LOG2E),
                         jnp.float32(0.0))

    # ---- q-tile size: 128 on v5e (128x128 MXU), 256 on v6e/v7x; shrink until
    # the footprint fits ~75% of this chip's physical VMEM.
    max_bq = 128 if _is_v5e() else 256
    if block_q is None:
        block_q = Lq if Lq <= max_bq else max_bq
    if block_q >= Lq:
        block_q = Lq
    else:
        block_q = max(8, (block_q // 8) * 8)   # sublane-aligned when tiling

    bias_cols = 0 if bias is None else bias.shape[3]
    bias_rows_full = bias is not None and bias.shape[2] > 1

    def footprint(bq):
        # double-buffered pipeline buffers (2x each input/output block)
        dbuf = 2 * (bq * Dk * in_esize          # q tile
                    + Lk * Dk * in_esize        # K block (resident per head)
                    + Lk * Dv * in_esize        # V block
                    + bq * Dv * in_esize        # o tile
                    + bq * Lk * attn_esize)     # attn tile
        if bias is not None:
            dbuf += 2 * (bq if bias_rows_full else 1) * bias_cols * 4
        # live f32 intermediates (s, p, + one tile in flight)
        inter = 3 * bq * Lk * 4
        return dbuf + inter

    budget = int(0.75 * _vmem_capacity_bytes())
    while footprint(block_q) > budget and block_q > 64:
        block_q = max(64, (block_q // 2) // 8 * 8)

    n_qt = pl.cdiv(Lq, block_q)
    Lq_pad = n_qt * block_q
    pad = Lq_pad - Lq
    if pad:
        # Zero-pad the query axis so every q-tile is full; padded rows produce
        # a harmless uniform softmax and are sliced off below.
        q = jnp.pad(q, ((0, 0), (0, 0), (0, pad), (0, 0)))
        if bias is not None and bias_rows_full:
            bias = jnp.pad(bias, ((0, 0), (0, 0), (0, pad), (0, 0)))

    grid = (B, H, n_qt)
    q_spec = pl.BlockSpec((None, None, block_q, Dk), lambda b, h, t: (b, h, t, 0))
    # K/V index maps ignore the q-tile index -> block stays resident (no
    # re-DMA) across the inner q-tile steps of each (b, h).
    k_spec = pl.BlockSpec((None, None, Lk, Dk), lambda b, h, t: (b, h, 0, 0))
    v_spec = pl.BlockSpec((None, None, Lk, Dv), lambda b, h, t: (b, h, 0, 0))
    o_spec = pl.BlockSpec((None, None, block_q, Dv), lambda b, h, t: (b, h, t, 0))
    a_spec = pl.BlockSpec((None, None, block_q, Lk), lambda b, h, t: (b, h, t, 0))

    out_shapes = (
        jax.ShapeDtypeStruct((B, H, Lq_pad, Dv), out_dtype),
        jax.ShapeDtypeStruct((B, H, Lq_pad, Lk), attn_dtype),
    )

    scale = float(_LOG2E) / float(temperature)
    in_specs = [q_spec, k_spec, v_spec]
    args = [q, k, v]
    if bias is None:
        kernel = functools.partial(_sdpa_kernel, scale=scale,
                                   matmul_dtype=matmul_dtype)
    else:
        mB, mH, mLq, mLk = bias.shape
        m_block_q = block_q if mLq > 1 else 1
        b_spec = pl.BlockSpec((None, None, m_block_q, mLk),
                              _mask_index_map(mB > 1, mH > 1, mLq > 1))
        in_specs.append(b_spec)
        args.append(bias)
        kernel = functools.partial(_sdpa_bias_kernel, scale=scale,
                                   matmul_dtype=matmul_dtype)

    flops = 2 * B * H * Lq_pad * Lk * (Dk + Dv)
    bytes_accessed = ((q.size + k.size + v.size) * in_esize
                      + B * H * Lq_pad * Dv * in_esize
                      + B * H * Lq_pad * Lk * attn_esize
                      + (0 if bias is None else bias.size * 4))

    vmem_limit = int(min(budget,
                         max(32 * 1024 * 1024, footprint(block_q) + (4 << 20))))

    out, attn = pl.pallas_call(
        kernel,
        out_shape=out_shapes,
        grid_spec=pltpu.PrefetchScalarGridSpec(
            num_scalar_prefetch=0,
            grid=grid,
            in_specs=in_specs,
            out_specs=[o_spec, a_spec],
        ),
        compiler_params=pltpu.CompilerParams(
            dimension_semantics=("parallel", "parallel", "parallel"),
            vmem_limit_bytes=vmem_limit),
        cost_estimate=pl.CostEstimate(
            flops=int(flops),
            transcendentals=int(B * H * Lq_pad * Lk),
            bytes_accessed=int(bytes_accessed)),
    )(*args)

    if pad:
        out = out[:, :, :Lq, :]
        attn = attn[:, :, :Lq, :]
    return out, attn


def _reference(q, k, v, temperature, mask=None):
    attn = jnp.matmul(q / temperature, jnp.swapaxes(k, 2, 3))
    if mask is not None:
        attn = jnp.where(mask == 0, _MASK_FILL, attn)
    attn = jax.nn.softmax(attn, axis=-1)
    out = jnp.matmul(attn, v)
    return out, attn


def _check(got, ref, atol):
    np.testing.assert_allclose(
        np.asarray(jnp.asarray(got, dtype=jnp.float32)),
        np.asarray(jnp.asarray(ref, dtype=jnp.float32)),
        atol=atol)


if __name__ == "__main__":
    key = jax.random.PRNGKey(0)

    # ---- Case 1: small module-like shapes, f32, broadcastable (B,1,Lq,Lk) mask.
    B, H, Lq, Lk, Dk, Dv = 2, 2, 8, 8, 32, 32
    temperature = float(np.sqrt(Dk))
    kq, kk, kv, km = jax.random.split(key, 4)
    q = jax.random.normal(kq, (B, H, Lq, Dk), dtype=jnp.float32)
    k = jax.random.normal(kk, (B, H, Lk, Dk), dtype=jnp.float32)
    v = jax.random.normal(kv, (B, H, Lk, Dv), dtype=jnp.float32)
    mask = (jax.random.uniform(km, (B, 1, Lq, Lk)) > 0.3).astype(jnp.int32)
    mask = mask.at[..., 0].set(1)  # keep >=1 valid key per row (degenerate rows excluded)

    out, attn = jax.block_until_ready(
        scaled_dot_product_attention(q, k, v, temperature))
    ref_out, ref_attn = _reference(q, k, v, temperature)
    _check(out, ref_out, 1e-5)
    _check(attn, ref_attn, 1e-5)

    out_m, attn_m = jax.block_until_ready(
        scaled_dot_product_attention(q, k, v, temperature, mask=mask))
    ref_out_m, ref_attn_m = _reference(q, k, v, temperature, mask=mask)
    _check(out_m, ref_out_m, 1e-5)
    _check(attn_m, ref_attn_m, 1e-5)

    # ---- Case 2: longer sequence to exercise the Lq-tiling path
    # (block_q<=256 -> multiple q-tiles per head, K/V block resident across them).
    B2, H2, Lq2, Lk2, Dk2, Dv2 = 1, 2, 512, 256, 64, 64
    t2 = float(np.sqrt(Dk2))
    k2q, k2k, k2v, k2m = jax.random.split(jax.random.PRNGKey(1), 4)
    q2 = jax.random.normal(k2q, (B2, H2, Lq2, Dk2), dtype=jnp.float32)
    k2 = jax.random.normal(k2k, (B2, H2, Lk2, Dk2), dtype=jnp.float32)
    v2 = jax.random.normal(k2v, (B2, H2, Lk2, Dv2), dtype=jnp.float32)
    mask2 = (jax.random.uniform(k2m, (1, 1, Lq2, Lk2)) > 0.2).astype(jnp.int32)
    mask2 = mask2.at[..., 0].set(1)

    out2, attn2 = jax.block_until_ready(
        scaled_dot_product_attention(q2, k2, v2, t2, mask=mask2))
    ref_out2, ref_attn2 = _reference(q2, k2, v2, t2, mask=mask2)
    _check(out2, ref_out2, 1e-3)
    _check(attn2, ref_attn2, 1e-3)

    # ---- Case 3: ragged Lq (not divisible by block_q) -> padded path, with mask.
    B3, H3, Lq3, Lk3, Dk3, Dv3 = 1, 2, 300, 128, 32, 32
    t3 = float(np.sqrt(Dk3))
    k3q, k3k, k3v, k3m = jax.random.split(jax.random.PRNGKey(2), 4)
    q3 = jax.random.normal(k3q, (B3, H3, Lq3, Dk3), dtype=jnp.float32)
    k3 = jax.random.normal(k3k, (B3, H3, Lk3, Dk3), dtype=jnp.float32)
    v3 = jax.random.normal(k3v, (B3, H3, Lk3, Dv3), dtype=jnp.float32)
    mask3 = (jax.random.uniform(k3m, (1, 1, Lq3, Lk3)) > 0.25).astype(jnp.int32)
    mask3 = mask3.at[..., 0].set(1)

    out3, attn3 = jax.block_until_ready(
        scaled_dot_product_attention(q3, k3, v3, t3, mask=mask3))
    ref_out3, ref_attn3 = _reference(q3, k3, v3, t3, mask=mask3)
    _check(out3, ref_out3, 1e-4)
    _check(attn3, ref_attn3, 1e-4)

    # ---- Case 4: attn_dtype=bf16 knob (halves the dominant attn HBM write;
    # output stays f32-accurate via the decoupled normalization path).
    out4, attn4 = jax.block_until_ready(
        scaled_dot_product_attention(q, k, v, temperature, mask=mask,
                                     attn_dtype=jnp.bfloat16))
    _check(out4, ref_out_m, 1e-5)
    _check(attn4, ref_attn_m, 1e-2)

    print("KERNEL_OK")
</pallas_src>

<mosaic_0001>
module attributes {stable_mosaic.version = 11 : i64} {
  func.func @_sdpa_kernel(%arg0: i32, %arg1: i32, %arg2: i32, %arg3: memref<1x1x8x32xf32, #tpu.memory_space<vmem>>, %arg4: memref<1x1x8x32xf32, #tpu.memory_space<vmem>>, %arg5: memref<1x1x8x32xf32, #tpu.memory_space<vmem>>, %arg6: memref<1x1x8x32xf32, #tpu.memory_space<vmem>>, %arg7: memref<1x1x8x8xf32, #tpu.memory_space<vmem>>) attributes {dimension_semantics = [#tpu.dimension_semantics<parallel>, #tpu.dimension_semantics<parallel>, #tpu.dimension_semantics<parallel>], iteration_bounds = array<i64: 2, 2, 1>, scalar_prefetch = 0 : i64, scratch_operands = 0 : i64, tpu.core_type = #tpu.core_type<tc>, window_params = [{transform_indices = @transform_0, window_bounds = array<i64: 1, 1, 8, 32>}, {transform_indices = @transform_1, window_bounds = array<i64: 1, 1, 8, 32>}, {transform_indices = @transform_2, window_bounds = array<i64: 1, 1, 8, 32>}, {transform_indices = @transform_3, window_bounds = array<i64: 1, 1, 8, 32>}, {transform_indices = @transform_4, window_bounds = array<i64: 1, 1, 8, 8>}]} {
    %c0 = arith.constant 0 : index
    %c0_0 = arith.constant 0 : index
    %c0_1 = arith.constant 0 : index
    %c0_2 = arith.constant 0 : index
    %0 = vector.load %arg3[%c0, %c0_0, %c0_1, %c0_2] : memref<1x1x8x32xf32, #tpu.memory_space<vmem>>, vector<1x1x8x32xf32>
    %1 = vector.shape_cast %0 : vector<1x1x8x32xf32> to vector<8x32xf32>
    %c0_3 = arith.constant 0 : index
    %c0_4 = arith.constant 0 : index
    %c0_5 = arith.constant 0 : index
    %c0_6 = arith.constant 0 : index
    %2 = vector.load %arg4[%c0_3, %c0_4, %c0_5, %c0_6] : memref<1x1x8x32xf32, #tpu.memory_space<vmem>>, vector<1x1x8x32xf32>
    %3 = vector.shape_cast %2 : vector<1x1x8x32xf32> to vector<8x32xf32>
    %c0_7 = arith.constant 0 : index
    %c0_8 = arith.constant 0 : index
    %c0_9 = arith.constant 0 : index
    %c0_10 = arith.constant 0 : index
    %4 = vector.load %arg5[%c0_7, %c0_8, %c0_9, %c0_10] : memref<1x1x8x32xf32, #tpu.memory_space<vmem>>, vector<1x1x8x32xf32>
    %5 = vector.shape_cast %4 : vector<1x1x8x32xf32> to vector<8x32xf32>
    %cst = arith.constant 0.255034864 : f32
    %6 = vector.broadcast %cst : f32 to vector<8x32xf32>
    %7 = arith.mulf %1, %6 : vector<8x32xf32>
    %cst_11 = arith.constant dense<0.000000e+00> : vector<8x8xf32>
    %8 = tpu.matmul %7, %3, %cst_11 {dimension_numbers = #tpu.dot_dimension_numbers<[1], [1], [0], [0], [0, 0, 1, 0], [], []>} : vector<8x32xf32>, vector<8x32xf32>, vector<8x8xf32> -> vector<8x8xf32>
    %cst_12 = arith.constant dense<0xFF800000> : vector<8xf32>
    %9 = vector.multi_reduction <maximumf>, %8, %cst_12 [1] : vector<8x8xf32> to vector<8xf32>
    %10 = vector.shape_cast %9 : vector<8xf32> to vector<8x1xf32>
    %11 = vector.broadcast %10 : vector<8x1xf32> to vector<8x8xf32>
    %12 = arith.subf %8, %11 : vector<8x8xf32>
    %13 = math.exp2 %12 : vector<8x8xf32>
    %cst_13 = arith.constant dense<0.000000e+00> : vector<8xf32>
    %14 = vector.multi_reduction <add>, %13, %cst_13 [1] : vector<8x8xf32> to vector<8xf32>
    %15 = vector.shape_cast %14 : vector<8xf32> to vector<8x1xf32>
    %16 = tpu.reciprocal %15 : vector<8x1xf32> -> vector<8x1xf32>
    %17 = vector.broadcast %16 : vector<8x1xf32> to vector<8x8xf32>
    %18 = arith.mulf %13, %17 : vector<8x8xf32>
    %c0_14 = arith.constant 0 : index
    %c0_15 = arith.constant 0 : index
    %c0_16 = arith.constant 0 : index
    %c0_17 = arith.constant 0 : index
    %19 = vector.load %arg7[%c0_14, %c0_15, %c0_16, %c0_17] : memref<1x1x8x8xf32, #tpu.memory_space<vmem>>, vector<1x1x8x8xf32>
    %20 = vector.shape_cast %19 : vector<1x1x8x8xf32> to vector<8x8xf32>
    %21 = vector.shape_cast %18 : vector<8x8xf32> to vector<1x1x8x8xf32>
    tpu.vector_store %arg7[%c0_14, %c0_15, %c0_16, %c0_17], %21 {strides = array<i32>} : memref<1x1x8x8xf32, #tpu.memory_space<vmem>>, vector<1x1x8x8xf32>,
    %cst_18 = arith.constant dense<0.000000e+00> : vector<8x32xf32>
    %22 = tpu.matmul %18, %5, %cst_18 {dimension_numbers = #tpu.dot_dimension_numbers<[1], [0], [0], [1], [0, 0, 1, 1], [], []>} : vector<8x8xf32>, vector<8x32xf32>, vector<8x32xf32> -> vector<8x32xf32>
    %c0_19 = arith.constant 0 : index
    %c0_20 = arith.constant 0 : index
    %c0_21 = arith.constant 0 : index
    %c0_22 = arith.constant 0 : index
    %23 = vector.load %arg6[%c0_19, %c0_20, %c0_21, %c0_22] : memref<1x1x8x32xf32, #tpu.memory_space<vmem>>, vector<1x1x8x32xf32>
    %24 = vector.shape_cast %23 : vector<1x1x8x32xf32> to vector<8x32xf32>
    %25 = vector.shape_cast %22 : vector<8x32xf32> to vector<1x1x8x32xf32>
    tpu.vector_store %arg6[%c0_19, %c0_20, %c0_21, %c0_22], %25 {strides = array<i32>} : memref<1x1x8x32xf32, #tpu.memory_space<vmem>>, vector<1x1x8x32xf32>,
    return
  }
  func.func @transform_0(%arg0: i32, %arg1: i32, %arg2: i32) -> (i32, i32, i32, i32) {
    %c0_i32 = arith.constant 0 : i32
    %c0_i32_0 = arith.constant 0 : i32
    return %arg0, %arg1, %arg2, %c0_i32 : i32, i32, i32, i32
  }
  func.func @transform_1(%arg0: i32, %arg1: i32, %arg2: i32) -> (i32, i32, i32, i32) {
    %c0_i32 = arith.constant 0 : i32
    %c0_i32_0 = arith.constant 0 : i32
    %c0_i32_1 = arith.constant 0 : i32
    return %arg0, %arg1, %c0_i32, %c0_i32_0 : i32, i32, i32, i32
  }
  func.func @transform_2(%arg0: i32, %arg1: i32, %arg2: i32) -> (i32, i32, i32, i32) {
    %c0_i32 = arith.constant 0 : i32
    %c0_i32_0 = arith.constant 0 : i32
    %c0_i32_1 = arith.constant 0 : i32
    return %arg0, %arg1, %c0_i32, %c0_i32_0 : i32, i32, i32, i32
  }
  func.func @transform_3(%arg0: i32, %arg1: i32, %arg2: i32) -> (i32, i32, i32, i32) {
    %c0_i32 = arith.constant 0 : i32
    %c0_i32_0 = arith.constant 0 : i32
    return %arg0, %arg1, %arg2, %c0_i32 : i32, i32, i32, i32
  }
  func.func @transform_4(%arg0: i32, %arg1: i32, %arg2: i32) -> (i32, i32, i32, i32) {
    %c0_i32 = arith.constant 0 : i32
    %c0_i32_0 = arith.constant 0 : i32
    return %arg0, %arg1, %arg2, %c0_i32 : i32, i32, i32, i32
  }
}

</mosaic_0001>

<llo_original>
// kernel: tpu_custom_call.1
$region0: #{tpu_custom_call.1}
  #allocation0 [shape = 'u32[]', space=smem, size = 0x4, offset = 0x4, fixed_abs, tag = 'smem constant byte address 0x4 - core index']
  #allocation1 [shape = 'u32[72,128]{1,0:T(1,128)}', space=vmem, size = 0x9000, scoped, tag = 'internal scratch']
  %s0 = inlined_call_operand.hbm [shape: f32[2,2,8,32], index: 0, kind: input, shape index: {}]
  %s1 = inlined_call_operand.hbm [shape: f32[2,2,8,32], index: 1, kind: input, shape index: {}]
  %s2 = inlined_call_operand.hbm [shape: f32[2,2,8,32], index: 2, kind: input, shape index: {}]
  %s3 = inlined_call_operand.hbm [shape: f32[2,2,8,32], index: 3, kind: output, shape index: {0}]
  %s4 = inlined_call_operand.hbm [shape: f32[2,2,8,8], index: 4, kind: output, shape index: {1}]
  %5 = xla_tuple %s3, %s4
  %s6 = sld [smem:[#allocation0]]
  $region65: #{tpu_custom_call.1} parent=0
    _
  %s8 = ssub.s32 1, %s6
  %s9 = scalar_select 0, %s8, %s6
  $region1: #{tpu_custom_call.1} parent=0
    #allocation2 [shape = 'u8[8192]{0}', space=vmem, size = 0x2000, scoped, tag = 'input window, operand 0']
    #allocation3 [shape = 's32[2]{0}', space=sflag, size = 0x8, scoped, tag = 'scoped memory for tpu_custom_call.1']
    #allocation4 [shape = 's32[2]{0}', space=sflag, size = 0x8, scoped, tag = 'scoped memory for tpu_custom_call.1']
    #allocation5 [shape = 'u8[8192]{0}', space=vmem, size = 0x2000, scoped, tag = 'input window, operand 1']
    #allocation6 [shape = 's32[2]{0}', space=sflag, size = 0x8, scoped, tag = 'scoped memory for tpu_custom_call.1']
    #allocation7 [shape = 'u8[8192]{0}', space=vmem, size = 0x2000, scoped, tag = 'input window, operand 2']
    #allocation8 [shape = 'u8[8192]{0}', space=vmem, size = 0x2000, scoped, tag = 'output window, operand 0']
    #allocation9 [shape = 'u8[8192]{0}', space=vmem, size = 0x2000, scoped, tag = 'output window, operand 1']
    #allocation10 [shape = 's32[2]{0}', space=sflag, size = 0x8, scoped, tag = 'scoped memory for tpu_custom_call.1']
    %10 = vsyncpa [#allocation3], 0
    %s11 = scalar_lea.sflag [#allocation3], 1
    %12 = vsyncpa %s11, 0
    %13 = vsyncpa [#allocation6], 0
    %s14 = scalar_lea.sflag [#allocation6], 1
    %15 = vsyncpa %s14, 0
    %16 = vsyncpa [#allocation4], 0
    %s17 = scalar_lea.sflag [#allocation4], 1
    %18 = vsyncpa %s17, 0
    %19 = vsyncpa [#allocation10], 0
    %s20 = scalar_lea.sflag [#allocation10], 1
    %21 = vsyncpa %s20, 0
    loop: start=0, step=1, limit=6
    $region2: #{tpu_custom_call.1} parent=1 // loop_pre_header
      _
    $region3: #{tpu_custom_call.1} parent=1 // loop_header
      %s23 = sphi 0, %s27
      %p24 = scmp.ge.s32.totalorder %s23, 6
      %s30 = sphi 0, %s49
      %s31 = sphi 0, %s45
      %s32 = sphi 0, %s41
      %s33 = sphi 0, %s30
      %s34 = sphi 0, %s31
      %s35 = sphi 0, %s32
      %s36 = sphi 0, %s33
      %s37 = sphi 0, %s34
      %s38 = sphi 0, %s35
      %s56 = sphi 0, %s58
      %s59 = sphi 0, %s56
      %s60 = sphi 0, %s59
      %s76 = sphi 0, %s60
      %s84 = sphi 0, %s86
      %s87 = sphi 0, %s84
      %s88 = sphi 0, %s87
      %s104 = sphi 0, %s88
      %s112 = sphi 0, %s114
      %s115 = sphi 0, %s112
      %s116 = sphi 0, %s115
      %s132 = sphi 0, %s116
      %s142 = sphi 0, %s144
      %s145 = sphi 0, %s142
      %s146 = sphi 0, %s145
      %s162 = sphi 0, %s146
      %s172 = sphi 0, %s174
      %s175 = sphi 0, %s172
      %s176 = sphi 0, %s175
      %s192 = sphi 0, %s176
    $region4: #{tpu_custom_call.1} parent=1 // loop_header_branch
      %26 = sbr.rel (%p24) target = $region8
    $region5: #{tpu_custom_call.1} parent=1 // loop_body
      %s28 = ssub.s32 %s23, 1
      %s29 = ssub.s32 %s23, 2
      %s39 = sadd.s32 1, %s32
      %p40 = scmp.ge.s32.totalorder %s39, 1
      %s41 = scalar_select %p40, 0, %s39
      %s42 = sadd.s32 1, %s31
      %s43 = scalar_select %p40, %s42, %s31
      %p44 = scmp.ge.s32.totalorder %s43, 2
      %s45 = scalar_select %p44, 0, %s43
      %s46 = sadd.s32 1, %s30
      %s47 = scalar_select %p44, %s46, %s30
      %p48 = scmp.ge.s32.totalorder %s47, 2
      %s49 = scalar_select %p48, 0, %s47
      %s50 = ssub.s32 %s30, %s49
      %s51 = ssub.s32 %s31, %s45
      %s52 = sor.u32 %s50, %s51
      %s53 = ssub.s32 %s32, %s41
      %s54 = sor.u32 %s52, %s53
      %p55 = scmp.eq.s32.totalorder %s54, 0
      %s57 = sadd.s32 %s56, 1
      %s58 = scalar_select %p55, %s56, %s57
      %p61 = pneg %p55
      %p62 = scmp.eq.s32.totalorder %s23, 3
      %p63 = por %p61, %p62
      %p64 = scmp.ne.s32.totalorder %s56, %s59
      %p65 = scmp.eq.s32.totalorder %s23, 0
      %p66 = por %p64, %p65
      %p67 = scmp.ne.s32.totalorder %s56, %s59
      %p68 = scmp.eq.s32.totalorder %s28, 3
      %p69 = por %p67, %p68
      %p70 = scmp.ne.s32.totalorder %s59, %s60
      %p71 = scmp.eq.s32.totalorder %s28, 0
      %p72 = por %p70, %p71
      %p73 = scmp.ne.s32.totalorder %s59, %s60
      %p74 = scmp.eq.s32.totalorder %s29, 3
      %p75 = por %p73, %p74
      %p77 = scmp.ne.s32.totalorder %s60, %s76
      %p78 = scmp.eq.s32.totalorder %s29, 0
      %p79 = por %p77, %p78
      %s80 = ssub.s32 %s30, %s49
      %s81 = ssub.s32 %s31, %s45
      %s82 = sor.u32 %s80, %s81
      %p83 = scmp.eq.s32.totalorder %s82, 0
      %s85 = sadd.s32 %s84, 1
      %s86 = scalar_select %p83, %s84, %s85
      %p89 = pneg %p83
      %p90 = scmp.eq.s32.totalorder %s23, 3
      %p91 = por %p89, %p90
      %p92 = scmp.ne.s32.totalorder %s84, %s87
      %p93 = scmp.eq.s32.totalorder %s23, 0
      %p94 = por %p92, %p93
      %p95 = scmp.ne.s32.totalorder %s84, %s87
      %p96 = scmp.eq.s32.totalorder %s28, 3
      %p97 = por %p95, %p96
      %p98 = scmp.ne.s32.totalorder %s87, %s88
      %p99 = scmp.eq.s32.totalorder %s28, 0
      %p100 = por %p98, %p99
      %p101 = scmp.ne.s32.totalorder %s87, %s88
      %p102 = scmp.eq.s32.totalorder %s29, 3
      %p103 = por %p101, %p102
      %p105 = scmp.ne.s32.totalorder %s88, %s104
      %p106 = scmp.eq.s32.totalorder %s29, 0
      %p107 = por %p105, %p106
      %s108 = ssub.s32 %s30, %s49
      %s109 = ssub.s32 %s31, %s45
      %s110 = sor.u32 %s108, %s109
      %p111 = scmp.eq.s32.totalorder %s110, 0
      %s113 = sadd.s32 %s112, 1
      %s114 = scalar_select %p111, %s112, %s113
      %p117 = pneg %p111
      %p118 = scmp.eq.s32.totalorder %s23, 3
      %p119 = por %p117, %p118
      %p120 = scmp.ne.s32.totalorder %s112, %s115
      %p121 = scmp.eq.s32.totalorder %s23, 0
      %p122 = por %p120, %p121
      %p123 = scmp.ne.s32.totalorder %s112, %s115
      %p124 = scmp.eq.s32.totalorder %s28, 3
      %p125 = por %p123, %p124
      %p126 = scmp.ne.s32.totalorder %s115, %s116
      %p127 = scmp.eq.s32.totalorder %s28, 0
      %p128 = por %p126, %p127
      %p129 = scmp.ne.s32.totalorder %s115, %s116
      %p130 = scmp.eq.s32.totalorder %s29, 3
      %p131 = por %p129, %p130
      %p133 = scmp.ne.s32.totalorder %s116, %s132
      %p134 = scmp.eq.s32.totalorder %s29, 0
      %p135 = por %p133, %p134
      %s136 = ssub.s32 %s30, %s49
      %s137 = ssub.s32 %s31, %s45
      %s138 = sor.u32 %s136, %s137
      %s139 = ssub.s32 %s32, %s41
      %s140 = sor.u32 %s138, %s139
      %p141 = scmp.eq.s32.totalorder %s140, 0
      %s143 = sadd.s32 %s142, 1
      %s144 = scalar_select %p141, %s142, %s143
      %p147 = pneg %p141
      %p148 = scmp.eq.s32.totalorder %s23, 3
      %p149 = por %p147, %p148
      %p150 = scmp.ne.s32.totalorder %s142, %s145
      %p151 = scmp.eq.s32.totalorder %s23, 0
      %p152 = por %p150, %p151
      %p153 = scmp.ne.s32.totalorder %s142, %s145
      %p154 = scmp.eq.s32.totalorder %s28, 3
      %p155 = por %p153, %p154
      %p156 = scmp.ne.s32.totalorder %s145, %s146
      %p157 = scmp.eq.s32.totalorder %s28, 0
      %p158 = por %p156, %p157
      %p159 = scmp.ne.s32.totalorder %s145, %s146
      %p160 = scmp.eq.s32.totalorder %s29, 3
      %p161 = por %p159, %p160
      %p163 = scmp.ne.s32.totalorder %s146, %s162
      %p164 = scmp.eq.s32.totalorder %s29, 0
      %p165 = por %p163, %p164
      %s166 = ssub.s32 %s30, %s49
      %s167 = ssub.s32 %s31, %s45
      %s168 = sor.u32 %s166, %s167
      %s169 = ssub.s32 %s32, %s41
      %s170 = sor.u32 %s168, %s169
      %p171 = scmp.eq.s32.totalorder %s170, 0
      %s173 = sadd.s32 %s172, 1
      %s174 = scalar_select %p171, %s172, %s173
      %p177 = pneg %p171
      %p178 = scmp.eq.s32.totalorder %s23, 3
      %p179 = por %p177, %p178
      %p180 = scmp.ne.s32.totalorder %s172, %s175
      %p181 = scmp.eq.s32.totalorder %s23, 0
      %p182 = por %p180, %p181
      %p183 = scmp.ne.s32.totalorder %s172, %s175
      %p184 = scmp.eq.s32.totalorder %s28, 3
      %p185 = por %p183, %p184
      %p186 = scmp.ne.s32.totalorder %s175, %s176
      %p187 = scmp.eq.s32.totalorder %s28, 0
      %p188 = por %p186, %p187
      %p189 = scmp.ne.s32.totalorder %s175, %s176
      %p190 = scmp.eq.s32.totalorder %s29, 3
      %p191 = por %p189, %p190
      %p193 = scmp.ne.s32.totalorder %s176, %s192
      %p194 = scmp.eq.s32.totalorder %s29, 0
      %p195 = por %p193, %p194
      %p196 = scmp.le.s32.totalorder 1, %s23
      %p197 = scmp.lt.s32.totalorder %s23, 5
      %p198 = pnand %p196, %p197
      %p199 = pneg %p198
      // Predicated region
      $region9: #{tpu_custom_call.1} parent=5 // pred_check
        _
      $region10: #{tpu_custom_call.1} parent=5 // pred_check_branch
        %201 = sbr.rel (%p198) target = $region12
      $region11: #{tpu_custom_call.1} parent=5 // pred_region
        %s202 = ssub.s32 %s23, 1
      $region12: #{tpu_custom_call.1} parent=5 // pred_fallthru
        _
      %p203 = scmp.lt.s32.totalorder %s23, 4
      // Predicated region
      $region13: #{tpu_custom_call.1} parent=5 // pred_check
        %p204 = pneg %p203
      $region14: #{tpu_custom_call.1} parent=5 // pred_check_branch
        %206 = sbr.rel (%p204) target = $region16
      $region15: #{tpu_custom_call.1} parent=5 // pred_region
        // Predicated region
        $region17: #{tpu_custom_call.1} parent=15 // pred_check
          %p207 = pneg %p66
        $region18: #{tpu_custom_call.1} parent=15 // pred_check_branch
          %209 = sbr.rel (%p207) target = $region20
        $region19: #{tpu_custom_call.1} parent=15 // pred_region
          %s210 = sand.u32 %s56, 1
          %s211 = scalar_lea.sflag [#allocation3], %s210
          %s212 = sand.u32 %s56, 1
          %s213 = smul.addr %s212, 8
          %s214 = scalar_lea.vmem [#allocation2], %s213
          %216 = vsyncadd %s211, 0
          %s217 = sadd.s32 %s32, %s31
          %s218 = smul.addr %s30, 2
          %s219 = sadd.s32 %s217, %s218
          %s220 = smul.addr %s219, 8
          %s221 = scalar_lea.hbm %s0, %s220
          %s223 = sshll.u32 %s221, 4
          %s224 = int_to_ptr.hbm [resolvable:$true] %s223
          %s225 = sshll.u32 %s214, 4
          %s226 = int_to_ptr.vmem [resolvable:$true] %s225
          %228 = dma.hbm_to_vmem [thread:$0]  %s224, 128, %s226, %s211
        $region20: #{tpu_custom_call.1} parent=15 // pred_fallthru
          _
        // Predicated region
        $region21: #{tpu_custom_call.1} parent=15 // pred_check
          %p229 = pneg %p94
        $region22: #{tpu_custom_call.1} parent=15 // pred_check_branch
          %231 = sbr.rel (%p229) target = $region24
        $region23: #{tpu_custom_call.1} parent=15 // pred_region
          %s232 = sand.u32 %s23, 1
          %s233 = scalar_lea.sflag [#allocation6], %s232
          %s234 = sand.u32 %s84, 1
          %s235 = smul.addr %s234, 8
          %s236 = scalar_lea.vmem [#allocation5], %s235
          %238 = vsyncadd %s233, 0
          %s239 = smul.addr %s30, 2
          %s240 = sadd.s32 %s31, %s239
          %s241 = smul.addr %s240, 8
          %s242 = scalar_lea.hbm %s1, %s241
          %s244 = sshll.u32 %s242, 4
          %s245 = int_to_ptr.hbm [resolvable:$true] %s244
          %s246 = sshll.u32 %s236, 4
          %s247 = int_to_ptr.vmem [resolvable:$true] %s246
          %249 = dma.hbm_to_vmem [thread:$0]  %s245, 128, %s247, %s233
        $region24: #{tpu_custom_call.1} parent=15 // pred_fallthru
          _
        // Predicated region
        $region25: #{tpu_custom_call.1} parent=15 // pred_check
          %p250 = pneg %p122
        $region26: #{tpu_custom_call.1} parent=15 // pred_check_branch
          %252 = sbr.rel (%p250) target = $region28
        $region27: #{tpu_custom_call.1} parent=15 // pred_region
          %s253 = sand.u32 %s23, 1
          %s254 = scalar_lea.sflag [#allocation6], %s253
          %s255 = sand.u32 %s112, 1
          %s256 = smul.addr %s255, 8
          %s257 = scalar_lea.vmem [#allocation7], %s256
          %259 = vsyncadd %s254, 0
          %s260 = smul.addr %s30, 2
          %s261 = sadd.s32 %s31, %s260
          %s262 = smul.addr %s261, 8
          %s263 = scalar_lea.hbm %s2, %s262
          %s265 = sshll.u32 %s263, 4
          %s266 = int_to_ptr.hbm [resolvable:$true] %s265
          %s267 = sshll.u32 %s257, 4
          %s268 = int_to_ptr.vmem [resolvable:$true] %s267
          %270 = dma.hbm_to_vmem [thread:$0]  %s266, 128, %s268, %s254
        $region28: #{tpu_custom_call.1} parent=15 // pred_fallthru
          _
      $region16: #{tpu_custom_call.1} parent=5 // pred_fallthru
        _
      %p271 = scmp.le.s32.totalorder 1, %s23
      %p272 = scmp.lt.s32.totalorder %s23, 5
      %p273 = pnand %p271, %p272
      %p274 = pneg %p273
      // Predicated region
      $region29: #{tpu_custom_call.1} parent=5 // pred_check
        _
      $region30: #{tpu_custom_call.1} parent=5 // pred_check_branch
        %276 = sbr.rel (%p273) target = $region32
      $region31: #{tpu_custom_call.1} parent=5 // pred_region
        %s277 = ssub.s32 %s23, 1
        %s278 = sand.u32 %s59, 1
        %s279 = scalar_lea.sflag [#allocation3], %s278
        %s280 = sand.u32 %s59, 1
        %s281 = smul.addr %s280, 8
        %s282 = scalar_lea.vmem [#allocation2], %s281
        // Predicated region
        $region33: #{tpu_custom_call.1} parent=31 // pred_check
          %p283 = pneg %p72
        $region34: #{tpu_custom_call.1} parent=31 // pred_check_branch
          %285 = sbr.rel (%p283) target = $region36
        $region35: #{tpu_custom_call.1} parent=31 // pred_region
          %287 = dma.done %s279, 128
        $region36: #{tpu_custom_call.1} parent=31 // pred_fallthru
          _
        %s288 = sand.u32 %s28, 1
        %s289 = scalar_lea.sflag [#allocation6], %s288
        %s290 = sand.u32 %s87, 1
        %s291 = smul.addr %s290, 8
        %s292 = scalar_lea.vmem [#allocation5], %s291
        // Predicated region
        $region37: #{tpu_custom_call.1} parent=31 // pred_check
          %p293 = pneg %p100
        $region38: #{tpu_custom_call.1} parent=31 // pred_check_branch
          %295 = sbr.rel (%p293) target = $region40
        $region39: #{tpu_custom_call.1} parent=31 // pred_region
          %297 = dma.done %s289, 128
        $region40: #{tpu_custom_call.1} parent=31 // pred_fallthru
          _
        %s298 = sand.u32 %s28, 1
        %s299 = scalar_lea.sflag [#allocation6], %s298
        %s300 = sand.u32 %s115, 1
        %s301 = smul.addr %s300, 8
        %s302 = scalar_lea.vmem [#allocation7], %s301
        // Predicated region
        $region41: #{tpu_custom_call.1} parent=31 // pred_check
          %p303 = pneg %p128
        $region42: #{tpu_custom_call.1} parent=31 // pred_check_branch
          %305 = sbr.rel (%p303) target = $region44
        $region43: #{tpu_custom_call.1} parent=31 // pred_region
          %307 = dma.done %s299, 128
        $region44: #{tpu_custom_call.1} parent=31 // pred_fallthru
          _
        %s308 = sand.u32 %s59, 1
        %s309 = scalar_lea.sflag [#allocation3], %s308
        %s310 = sand.u32 %s59, 1
        %s311 = smul.addr %s310, 8
        %s312 = scalar_lea.vmem [#allocation2], %s311
        %p313 = pneg %p72
        %p314 = pneg %p69
        %s315 = sand.u32 %s28, 1
        %s316 = scalar_lea.sflag [#allocation6], %s315
        %s317 = sand.u32 %s87, 1
        %s318 = smul.addr %s317, 8
        %s319 = scalar_lea.vmem [#allocation5], %s318
        %p320 = pneg %p100
        %p321 = pneg %p97
        %s322 = sand.u32 %s28, 1
        %s323 = scalar_lea.sflag [#allocation6], %s322
        %s324 = sand.u32 %s115, 1
        %s325 = smul.addr %s324, 8
        %s326 = scalar_lea.vmem [#allocation7], %s325
        %p327 = pneg %p128
        %p328 = pneg %p125
        %p329 = pneg %p158
        %p330 = pneg %p155
        %s331 = sand.u32 %s145, 1
        %s332 = scalar_lea.sflag [#allocation4], %s331
        %s333 = sand.u32 %s145, 1
        %s334 = smul.addr %s333, 8
        %s335 = scalar_lea.vmem [#allocation8], %s334
        %p336 = pneg %p188
        %p337 = pneg %p185
        %s338 = sand.u32 %s175, 1
        %s339 = scalar_lea.sflag [#allocation10], %s338
        %s340 = sand.u32 %s175, 1
        %s341 = smul.addr %s340, 8
        %s342 = scalar_lea.vmem [#allocation9], %s341
        %v343 = vld [vmem:[%s282] sm:$0xff]
        %v344 = vld [vmem:[%s292] sm:$0xff]
        %v345 = vld [vmem:[%s302] sm:$0xff]
        %v346 = vmul.f32 %v343, 0.25503486
        %vm347 = vcmask 261120
        %v349 = vsel %vm347, %v346, 0
        %v352 = vsel %vm347, %v344, 0
        %354 = vmatpush.xpose.msra.mxu0 0.0
        %355 = vmatpush.xpose.msra.mxu0 0.0
        %356 = vmatpush.xpose.msra.mxu0 0.0
        %357 = vmatpush.xpose.msra.mxu0 0.0
        %358 = vmatpush.xpose.msra.mxu0 0.0
        %359 = vmatpush.xpose.msra.mxu0 0.0
        %360 = vmatpush.xpose.msra.mxu0 0.0
        %361 = vmatpush.xpose.msra.mxu0 0.0
        %362 = vmatpush.xpose.msra.mxu0 0.0
        %363 = vmatpush.xpose.msra.mxu0 0.0
        %364 = vmatpush.xpose.msra.mxu0 0.0
        %365 = vmatpush.xpose.msra.mxu0 0.0
        %366 = vmatpush.xpose.msra.mxu0 0.0
        %367 = vmatpush.xpose.msra.mxu0 0.0
        %368 = vmatpush.xpose.msra.mxu0 0.0
        %369 = vmatpush.xpose.msra.mxu0 %v352
        %370 = vmatmul.f32.gmra.mxu0 %v349
        %v371 = vpop.f32.mrf.mxu0
        %v372 = vadd.f32 0.0, %v371
        %373 = vdwg.mxu0
        %vm374 = vcmask 64512
        %v375 = vsel %vm374, %v372, -inf
        %376 = vmax.xlane.f32.xlu0 %v375
        %v377 = vpop.xlane.xlu0 %376
        %v378 = vsub.f32 %v372, %v377
        %v379 = vpow.pop %v378
        %v380 = vsel %vm374, %v379, 0.0
        %381 = vadd.xlane.f32.xlu0 %v380
        %v382 = vpop.xlane.xlu0 %381
        %v383 = vrcp.pop %v382
        %v384 = vmul.f32 %v382, %v383
        %v385 = vsub.f32 1.0, %v384
        %v386 = vmul.f32 %v383, %v385
        %v387 = vadd.f32 %v383, %v386
        %vm388 = vweird.f32 %v382
        %vm389 = vweird.f32 %v383
        %vm390 = vmor %vm388, %vm389
        %v391 = vsel %vm390, %v383, %v387
        %v392 = vand.u32 2147483647, %v382
        %vm393 = vcmp.eq.f32.partialorder %v392, 8.507059e+37
        %v394 = vand.u32 %v382, 2147483648
        %v395 = vor.u32 1.1754944e-38, %v394
        %v396 = vsel %vm393, %v395, %v391
        %v397 = vmul.f32 %v379, %v396
        %398 = vst.msk [vmem:[%s342] sm:$0xff] %vm374, %v397
        %v400 = vsel %vm374, %v397, 0
        %402 = vmatpush.msra.mxu0 0.0
        %403 = vmatpush.msra.mxu0 0.0
        %404 = vmatpush.msra.mxu0 0.0
        %405 = vmatpush.msra.mxu0 0.0
        %406 = vmatpush.msra.mxu0 0.0
        %407 = vmatpush.msra.mxu0 0.0
        %408 = vmatpush.msra.mxu0 0.0
        %409 = vmatpush.msra.mxu0 0.0
        %410 = vmatpush.msra.mxu0 0.0
        %411 = vmatpush.msra.mxu0 0.0
        %412 = vmatpush.msra.mxu0 0.0
        %413 = vmatpush.msra.mxu0 0.0
        %414 = vmatpush.msra.mxu0 0.0
        %415 = vmatpush.msra.mxu0 0.0
        %416 = vmatpush.msra.mxu0 0.0
        %417 = vmatpush.msra.mxu0 %v345
        %418 = vmatmul.f32.gmra.mxu0 %v400
        %v419 = vpop.f32.mrf.mxu0
        %v420 = vadd.f32 0.0, %v419
        %421 = vdwg.mxu0
        %422 = vst.msk [vmem:[%s335] sm:$0xff] %vm347, %v420
        %s423 = sand.u32 %s145, 1
        %s424 = scalar_lea.sflag [#allocation4], %s423
        %s425 = sand.u32 %s145, 1
        %s426 = smul.addr %s425, 8
        %s427 = scalar_lea.vmem [#allocation8], %s426
        %s428 = sand.u32 %s175, 1
        %s429 = scalar_lea.sflag [#allocation10], %s428
        %s430 = sand.u32 %s175, 1
        %s431 = smul.addr %s430, 8
        %s432 = scalar_lea.vmem [#allocation9], %s431
        // Predicated region
        $region45: #{tpu_custom_call.1} parent=31 // pred_check
          %p433 = pneg %p155
        $region46: #{tpu_custom_call.1} parent=31 // pred_check_branch
          %435 = sbr.rel (%p433) target = $region48
        $region47: #{tpu_custom_call.1} parent=31 // pred_region
          %437 = vsyncadd %s424, 0
          %s438 = sadd.s32 %s35, %s34
          %s439 = smul.addr %s33, 2
          %s440 = sadd.s32 %s438, %s439
          %s441 = smul.addr %s440, 8
          %s442 = scalar_lea.hbm %s3, %s441
          %s444 = sshll.u32 %s427, 4
          %s445 = int_to_ptr.vmem [resolvable:$true] %s444
          %s446 = sshll.u32 %s442, 4
          %s447 = int_to_ptr.hbm [resolvable:$true] %s446
          %449 = dma.vmem_to_hbm [thread:$0]  %s445, 128, %s447, %s424
        $region48: #{tpu_custom_call.1} parent=31 // pred_fallthru
          _
        // Predicated region
        $region49: #{tpu_custom_call.1} parent=31 // pred_check
          %p450 = pneg %p185
        $region50: #{tpu_custom_call.1} parent=31 // pred_check_branch
          %452 = sbr.rel (%p450) target = $region52
        $region51: #{tpu_custom_call.1} parent=31 // pred_region
          %454 = vsyncadd %s429, 0
          %s455 = sadd.s32 %s35, %s34
          %s456 = smul.addr %s33, 2
          %s457 = sadd.s32 %s455, %s456
          %s458 = smul.addr %s457, 8
          %s459 = scalar_lea.hbm %s4, %s458
          %s461 = sshll.u32 %s432, 4
          %s462 = int_to_ptr.vmem [resolvable:$true] %s461
          %s463 = sshll.u32 %s459, 4
          %s464 = int_to_ptr.hbm [resolvable:$true] %s463
          %466 = dma.vmem_to_hbm [thread:$0]  %s462, 128, %s464, %s429
        $region52: #{tpu_custom_call.1} parent=31 // pred_fallthru
          _
      $region32: #{tpu_custom_call.1} parent=5 // pred_fallthru
        _
      %p467 = scmp.le.s32.totalorder 2, %s23
      // Predicated region
      $region53: #{tpu_custom_call.1} parent=5 // pred_check
        %p468 = pneg %p467
      $region54: #{tpu_custom_call.1} parent=5 // pred_check_branch
        %470 = sbr.rel (%p468) target = $region56
      $region55: #{tpu_custom_call.1} parent=5 // pred_region
        %s471 = ssub.s32 %s23, 2
        // Predicated region
        $region57: #{tpu_custom_call.1} parent=55 // pred_check
          %p472 = pneg %p161
        $region58: #{tpu_custom_call.1} parent=55 // pred_check_branch
          %474 = sbr.rel (%p472) target = $region60
        $region59: #{tpu_custom_call.1} parent=55 // pred_region
          %s475 = sand.u32 %s146, 1
          %s476 = scalar_lea.sflag [#allocation4], %s475
          %s477 = sand.u32 %s146, 1
          %s478 = smul.addr %s477, 8
          %s479 = scalar_lea.vmem [#allocation8], %s478
          %481 = dma.done %s476, 128
        $region60: #{tpu_custom_call.1} parent=55 // pred_fallthru
          _
        // Predicated region
        $region61: #{tpu_custom_call.1} parent=55 // pred_check
          %p482 = pneg %p191
        $region62: #{tpu_custom_call.1} parent=55 // pred_check_branch
          %484 = sbr.rel (%p482) target = $region64
        $region63: #{tpu_custom_call.1} parent=55 // pred_region
          %s485 = sand.u32 %s176, 1
          %s486 = scalar_lea.sflag [#allocation10], %s485
          %s487 = sand.u32 %s176, 1
          %s488 = smul.addr %s487, 8
          %s489 = scalar_lea.vmem [#allocation9], %s488
          %491 = dma.done %s486, 128
        $region64: #{tpu_custom_call.1} parent=55 // pred_fallthru
          _
      $region56: #{tpu_custom_call.1} parent=5 // pred_fallthru
        _
    $region6: #{tpu_custom_call.1} parent=1 // loop_footer
      %s27 = sadd.s32 1, %s23
    $region7: #{tpu_custom_call.1} parent=1 // loop_footer_branch
      %22 = sbr.rel target = $region3
    $region8: #{tpu_custom_call.1} parent=1 // loop_exit
      _
    %492 = vsyncpa [#allocation3], 1
    %s493 = scalar_lea.sflag [#allocation3], 1
    %494 = vsyncpa %s493, 1
    %495 = vsyncpa [#allocation6], 1
    %s496 = scalar_lea.sflag [#allocation6], 1
    %497 = vsyncpa %s496, 1
    %498 = vsyncpa [#allocation4], 1
    %s499 = scalar_lea.sflag [#allocation4], 1
    %500 = vsyncpa %s499, 1
    %501 = vsyncpa [#allocation10], 1
    %s502 = scalar_lea.sflag [#allocation10], 1
    %503 = vsyncpa %s502, 1

</llo_original>
